<compile_context>
chip_gen: v7x
topology: tpu7x:2x2x1
jax: 0.10.0
libtpu: 0.0.40
codegen_flags: <defaults>
</compile_context>

<pallas_src>
import functools

import jax
import jax.numpy as jnp
import numpy as np
from jax.experimental import pallas as pl
from jax.experimental.pallas import tpu as pltpu

# ----------------------------- problem sizes -----------------------------
B_TOTAL = 128    # total input rows handled by ONE pallas_call
TILE_B = 64      # rows per grid step (>= 8 sublanes, MXU-friendly M)
D_IN = 32        # input features
H = 64           # hidden features
D_OUT = 16       # output features
D_OUT_PAD = 128  # lane-dense output width (zero-padded columns baked into w2/b2)
N_MODELS = 8     # number of candidate models in model_list
K = 4            # top-k models kept by the mask
TEMPERATURE = 1.0

# PyTorch named_parameters order / shapes of the base MLP (Linear weight is (out, in)):
SHAPE_LIST = [(H, D_IN), (H,), (D_OUT, H), (D_OUT,)]
SIZES = [int(np.prod(s)) for s in SHAPE_LIST]
ITX = np.concatenate([[0], np.cumsum(SIZES)]).tolist()
P_TOTAL = ITX[-1]


# ----------------------------- fused Pallas kernel -----------------------------
def fused_merge_mlp_kernel(idx_ref, mask_ref, x_ref, w1_ref, b1_ref, w2_ref, b2_ref,
                           o_ref, w1_acc, b1_acc, w2_acc, b2_acc):
    """Grid = (batch_tiles, n_selected).  Per (b, j): accumulate model idx[j]'s params
    (scaled by mask_ref[j], already 1/k-folded) into f32 VMEM scratch; at the last j run
    the merged MLP on this batch tile.

    idx_ref  : SMEM (n_sel,) i32  (scalar prefetch; used only in the index_maps)
    mask_ref : SMEM (n_sel,) f32  per-selected-model weight, already scaled by 1/k
    x_ref    : (TILE_B, D_IN) f32
    w1_ref   : (1, D_IN, H) bf16         b1_ref : (1, 1, H) bf16
    w2_ref   : (1, H, D_OUT_PAD) bf16    b2_ref : (1, 1, D_OUT_PAD) bf16
    o_ref    : (TILE_B, D_OUT_PAD) f32   (lane-dense; padding columns are exactly zero)
    """
    del idx_ref  # consumed by the index_maps (gather), not by the body
    j = pl.program_id(1)
    m = mask_ref[j]

    @pl.when(j == 0)
    def _():
        w1_acc[...] = jnp.zeros_like(w1_acc)
        b1_acc[...] = jnp.zeros_like(b1_acc)
        w2_acc[...] = jnp.zeros_like(w2_acc)
        b2_acc[...] = jnp.zeros_like(b2_acc)

    # merge: scalar (SMEM) weight * bf16 tile, accumulated in f32
    w1_acc[...] += m * w1_ref[0].astype(jnp.float32)
    b1_acc[...] += m * b1_ref[0].astype(jnp.float32)
    w2_acc[...] += m * w2_ref[0].astype(jnp.float32)
    b2_acc[...] += m * b2_ref[0].astype(jnp.float32)

    @pl.when(j == pl.num_programs(1) - 1)
    def _():
        h = jnp.dot(x_ref[...], w1_acc[...],
                    preferred_element_type=jnp.float32) + b1_acc[...]
        h = jnp.maximum(h, 0.0)
        o_ref[...] = jnp.dot(h, w2_acc[...],
                             preferred_element_type=jnp.float32) + b2_acc[...]


def _fused_forward(idx, mask_sel, x, pt_w1, pt_b1, pt_w2, pt_b2):
    n_sel = idx.shape[0]
    nb = x.shape[0] // TILE_B
    return pl.pallas_call(
        fused_merge_mlp_kernel,
        out_shape=jax.ShapeDtypeStruct((x.shape[0], D_OUT_PAD), jnp.float32),
        grid_spec=pltpu.PrefetchScalarGridSpec(
            num_scalar_prefetch=1,              # idx -> SMEM, fed to every index_map
            grid=(nb, n_sel),
            in_specs=[
                pl.BlockSpec(memory_space=pltpu.MemorySpace.SMEM),                  # mask_sel
                pl.BlockSpec((TILE_B, D_IN), lambda b, j, idx: (b, 0)),             # x
                pl.BlockSpec((1, D_IN, H), lambda b, j, idx: (idx[j], 0, 0)),       # w1 stack
                pl.BlockSpec((1, 1, H), lambda b, j, idx: (idx[j], 0, 0)),          # b1 stack
                pl.BlockSpec((1, H, D_OUT_PAD), lambda b, j, idx: (idx[j], 0, 0)),  # w2 stack
                pl.BlockSpec((1, 1, D_OUT_PAD), lambda b, j, idx: (idx[j], 0, 0)),  # b2 stack
            ],
            out_specs=pl.BlockSpec((TILE_B, D_OUT_PAD), lambda b, j, idx: (b, 0)),
            scratch_shapes=[
                pltpu.VMEM((D_IN, H), jnp.float32),
                pltpu.VMEM((1, H), jnp.float32),
                pltpu.VMEM((H, D_OUT_PAD), jnp.float32),
                pltpu.VMEM((1, D_OUT_PAD), jnp.float32),
            ],
        ),
        compiler_params=pltpu.CompilerParams(
            dimension_semantics=("parallel", "arbitrary")),
    )(idx, mask_sel, x, pt_w1, pt_b1, pt_w2, pt_b2)


# ----------------------------- forward wrapper (plain JAX glue, jitted) -----------------------------
@functools.partial(jax.jit, static_argnames=("eval_mode",))
def merge_net_forward(mask_logit, pt_w1, pt_b1, pt_w2, pt_b2, x, gumbel_key, eval_mode=True):
    if eval_mode:
        # top-k mask: only the K selected models are DMA'd/merged, each with weight 1/k.
        _, idx = jax.lax.top_k(mask_logit, K)
        idx = idx.astype(jnp.int32)
        mask = jnp.zeros_like(mask_logit).at[idx].set(1.0)
        mask_sel = jnp.full((K,), 1.0 / K, dtype=jnp.float32)
    else:
        # gumbel-sigmoid straight-through: forward VALUE equals y_hard; may have != K active
        # entries, so merge over all N with the per-model mask weights (matching PyTorch,
        # which always divides by k).
        # TODO(synk): backward through the Pallas kernel (custom_vjp) is not implemented;
        # only the forward value matches PyTorch's straight-through estimator.
        eps = 1e-9
        u = jax.random.uniform(gumbel_key, mask_logit.shape, dtype=mask_logit.dtype)
        gumbel = -jnp.log(-jnp.log(u + eps) + eps)
        y = jax.nn.sigmoid((mask_logit + gumbel) / TEMPERATURE)
        y_hard = (y > 0.5).astype(y.dtype)
        mask = jax.lax.stop_gradient(y_hard - y) + y
        idx = jnp.arange(N_MODELS, dtype=jnp.int32)
        mask_sel = (mask * (1.0 / K)).astype(jnp.float32)

    out_pad = _fused_forward(idx, mask_sel, x, pt_w1, pt_b1, pt_w2, pt_b2)
    return out_pad[:, :D_OUT], mask


# ----------------------------- pure-JAX reference (original flattened layout) -----------------------------
def merged_mlp_ref(mask, params_tensor, x):
    merged = jnp.sum(mask[:, None] * params_tensor, axis=0) / K
    w1 = merged[ITX[0]:ITX[1]].reshape(SHAPE_LIST[0])
    b1 = merged[ITX[1]:ITX[2]]
    w2 = merged[ITX[2]:ITX[3]].reshape(SHAPE_LIST[2])
    b2 = merged[ITX[3]:ITX[4]]
    h = jnp.maximum(x @ w1.T + b1, 0.0)
    return h @ w2.T + b2


def merge_net_forward_ref_eval(mask_logit, params_tensor, x):
    _, idx = jax.lax.top_k(mask_logit, K)
    mask = jnp.zeros_like(mask_logit).at[idx].set(1.0)
    return merged_mlp_ref(mask, params_tensor, x)


# ----------------------------- main -----------------------------
if __name__ == "__main__":
    key = jax.random.PRNGKey(0)

    # Deterministic per-model parameters.  Stored precision is bf16 (what the kernel DMAs);
    # the flattened reference tensor uses the SAME bf16-rounded values upcast to f32 so the
    # numerical comparison is apples-to-apples.
    rows = []
    w1s, b1s, w2s, b2s = [], [], [], []
    for i in range(N_MODELS):
        ks = jax.random.split(jax.random.fold_in(key, i), 4)
        w1 = (0.1 * jax.random.normal(ks[0], SHAPE_LIST[0])).astype(jnp.bfloat16)  # (H, D_IN)
        b1 = (0.1 * jax.random.normal(ks[1], SHAPE_LIST[1])).astype(jnp.bfloat16)  # (H,)
        w2 = (0.1 * jax.random.normal(ks[2], SHAPE_LIST[2])).astype(jnp.bfloat16)  # (D_OUT, H)
        b2 = (0.1 * jax.random.normal(ks[3], SHAPE_LIST[3])).astype(jnp.bfloat16)  # (D_OUT,)
        rows.append(jnp.concatenate([w1.astype(jnp.float32).ravel(),
                                     b1.astype(jnp.float32).ravel(),
                                     w2.astype(jnp.float32).ravel(),
                                     b2.astype(jnp.float32).ravel()]))
        w1s.append(w1.T)                                                         # (D_IN, H) bf16
        b1s.append(b1.reshape(1, H))                                             # (1, H) bf16
        w2s.append(jnp.pad(w2.T, ((0, 0), (0, D_OUT_PAD - D_OUT))))              # (H, 128) bf16
        b2s.append(jnp.pad(b2.reshape(1, D_OUT), ((0, 0), (0, D_OUT_PAD - D_OUT))))  # (1, 128)

    params_tensor = jnp.stack(rows)          # (n, P) f32 (reference layout)
    pt_w1 = jnp.stack(w1s)                   # (n, D_IN, H)        bf16
    pt_b1 = jnp.stack(b1s)                   # (n, 1, H)           bf16
    pt_w2 = jnp.stack(w2s)                   # (n, H, D_OUT_PAD)   bf16
    pt_b2 = jnp.stack(b2s)                   # (n, 1, D_OUT_PAD)   bf16

    # mask_logit init as in MergeNet.__init__: zeros, every (n//k)-th entry = 0.001
    step = N_MODELS // K
    mask_logit = jnp.zeros((N_MODELS,), jnp.float32).at[::step].set(0.001)

    # input batch (many rows amortize the single pallas_call dispatch)
    x = jax.random.normal(jax.random.fold_in(key, 1234), (B_TOTAL, D_IN), dtype=jnp.float32)
    gkey = jax.random.fold_in(key, 999)

    # eval path (top-k gather in the DMA) — checked against the pure-JAX reference
    out, mask = merge_net_forward(mask_logit, pt_w1, pt_b1, pt_w2, pt_b2, x, gkey,
                                  eval_mode=True)
    out = jax.block_until_ready(out)
    out_ref = merge_net_forward_ref_eval(mask_logit, params_tensor, x)
    np.testing.assert_allclose(np.asarray(out), np.asarray(out_ref), rtol=1e-4, atol=1e-4)

    # training path (gumbel-sigmoid straight-through forward value, all-N merge) —
    # checked against the reference using the mask the wrapper actually produced.
    out_tr, mask_tr = merge_net_forward(mask_logit, pt_w1, pt_b1, pt_w2, pt_b2, x, gkey,
                                        eval_mode=False)
    out_tr = jax.block_until_ready(out_tr)
    out_tr_ref = merged_mlp_ref(mask_tr, params_tensor, x)
    np.testing.assert_allclose(np.asarray(out_tr), np.asarray(out_tr_ref), rtol=1e-4, atol=1e-4)

    # TODO(synk): get_model()/load_and_average_models/TaskVector operate on python dicts of
    # checkpoints (host-side bookkeeping) and have no device-kernel equivalent.
    print("KERNEL_OK")
</pallas_src>

<mosaic_0001>
module attributes {stable_mosaic.version = 11 : i64} {
  func.func @fused_merge_mlp_kernel(%arg0: i32, %arg1: i32, %arg2: memref<4xi32, #tpu.memory_space<smem>>, %arg3: memref<4xf32, #tpu.memory_space<smem>>, %arg4: memref<64x32xf32, #tpu.memory_space<vmem>>, %arg5: memref<1x32x64xbf16, #tpu.memory_space<vmem>>, %arg6: memref<1x1x64xbf16, #tpu.memory_space<vmem>>, %arg7: memref<1x64x128xbf16, #tpu.memory_space<vmem>>, %arg8: memref<1x1x128xbf16, #tpu.memory_space<vmem>>, %arg9: memref<64x128xf32, #tpu.memory_space<vmem>>, %arg10: memref<32x64xf32, #tpu.memory_space<vmem>>, %arg11: memref<1x64xf32, #tpu.memory_space<vmem>>, %arg12: memref<64x128xf32, #tpu.memory_space<vmem>>, %arg13: memref<1x128xf32, #tpu.memory_space<vmem>>) attributes {dimension_semantics = [#tpu.dimension_semantics<parallel>, #tpu.dimension_semantics<arbitrary>], iteration_bounds = array<i64: 2, 4>, scalar_prefetch = 1 : i64, scratch_operands = 4 : i64, tpu.core_type = #tpu.core_type<tc>, window_params = [{transform_indices = @transform_0, window_bounds = array<i64: 4>}, {transform_indices = @transform_1, window_bounds = array<i64: 64, 32>}, {transform_indices = @transform_2, window_bounds = array<i64: 1, 32, 64>}, {transform_indices = @transform_3, window_bounds = array<i64: 1, 1, 64>}, {transform_indices = @transform_4, window_bounds = array<i64: 1, 64, 128>}, {transform_indices = @transform_5, window_bounds = array<i64: 1, 1, 128>}, {transform_indices = @transform_6, window_bounds = array<i64: 64, 128>}]} {
    %0 = arith.index_cast %arg1 : i32 to index
    %1 = memref.load %arg3[%0] : memref<4xf32, #tpu.memory_space<smem>>
    %c0_i32 = arith.constant 0 : i32
    %2 = arith.cmpi eq, %arg1, %c0_i32 : i32
    %3 = arith.extui %2 : i1 to i32
    %c0_i32_0 = arith.constant 0 : i32
    %4 = arith.cmpi ne, %3, %c0_i32_0 : i32
    scf.if %4 {
      %cst = arith.constant 0.000000e+00 : f32
      %40 = vector.broadcast %cst : f32 to vector<32x64xf32>
      %c0_29 = arith.constant 0 : index
      %c0_30 = arith.constant 0 : index
      %41 = vector.load %arg10[%c0_29, %c0_30] : memref<32x64xf32, #tpu.memory_space<vmem>>, vector<32x64xf32>
      tpu.vector_store %arg10[%c0_29, %c0_30], %40 {strides = array<i32>} : memref<32x64xf32, #tpu.memory_space<vmem>>, vector<32x64xf32>,
      %cst_31 = arith.constant 0.000000e+00 : f32
      %42 = vector.broadcast %cst_31 : f32 to vector<1x64xf32>
      %c0_32 = arith.constant 0 : index
      %c0_33 = arith.constant 0 : index
      %43 = vector.load %arg11[%c0_32, %c0_33] : memref<1x64xf32, #tpu.memory_space<vmem>>, vector<1x64xf32>
      tpu.vector_store %arg11[%c0_32, %c0_33], %42 {strides = array<i32>} : memref<1x64xf32, #tpu.memory_space<vmem>>, vector<1x64xf32>,
      %cst_34 = arith.constant 0.000000e+00 : f32
      %44 = vector.broadcast %cst_34 : f32 to vector<64x128xf32>
      %c0_35 = arith.constant 0 : index
      %c0_36 = arith.constant 0 : index
      %45 = vector.load %arg12[%c0_35, %c0_36] : memref<64x128xf32, #tpu.memory_space<vmem>>, vector<64x128xf32>
      tpu.vector_store %arg12[%c0_35, %c0_36], %44 {strides = array<i32>} : memref<64x128xf32, #tpu.memory_space<vmem>>, vector<64x128xf32>,
      %cst_37 = arith.constant 0.000000e+00 : f32
      %46 = vector.broadcast %cst_37 : f32 to vector<1x128xf32>
      %c0_38 = arith.constant 0 : index
      %c0_39 = arith.constant 0 : index
      %47 = vector.load %arg13[%c0_38, %c0_39] : memref<1x128xf32, #tpu.memory_space<vmem>>, vector<1x128xf32>
      tpu.vector_store %arg13[%c0_38, %c0_39], %46 {strides = array<i32>} : memref<1x128xf32, #tpu.memory_space<vmem>>, vector<1x128xf32>,
    } else {
    }
    %c0 = arith.constant 0 : index
    %c0_1 = arith.constant 0 : index
    %5 = vector.load %arg10[%c0, %c0_1] : memref<32x64xf32, #tpu.memory_space<vmem>>, vector<32x64xf32>
    %c0_2 = arith.constant 0 : index
    %c0_3 = arith.constant 0 : index
    %c0_4 = arith.constant 0 : index
    %6 = vector.load %arg5[%c0_2, %c0_3, %c0_4] : memref<1x32x64xbf16, #tpu.memory_space<vmem>>, vector<1x32x64xbf16>
    %7 = vector.shape_cast %6 : vector<1x32x64xbf16> to vector<32x64xbf16>
    %8 = arith.extf %7 : vector<32x64xbf16> to vector<32x64xf32>
    %9 = vector.broadcast %1 : f32 to vector<32x64xf32>
    %10 = arith.mulf %9, %8 : vector<32x64xf32>
    %11 = arith.addf %5, %10 : vector<32x64xf32>
    %c0_5 = arith.constant 0 : index
    %c0_6 = arith.constant 0 : index
    %12 = vector.load %arg10[%c0_5, %c0_6] : memref<32x64xf32, #tpu.memory_space<vmem>>, vector<32x64xf32>
    tpu.vector_store %arg10[%c0_5, %c0_6], %11 {strides = array<i32>} : memref<32x64xf32, #tpu.memory_space<vmem>>, vector<32x64xf32>,
    %c0_7 = arith.constant 0 : index
    %c0_8 = arith.constant 0 : index
    %13 = vector.load %arg11[%c0_7, %c0_8] : memref<1x64xf32, #tpu.memory_space<vmem>>, vector<1x64xf32>
    %c0_9 = arith.constant 0 : index
    %c0_10 = arith.constant 0 : index
    %c0_11 = arith.constant 0 : index
    %14 = vector.load %arg6[%c0_9, %c0_10, %c0_11] : memref<1x1x64xbf16, #tpu.memory_space<vmem>>, vector<1x1x64xbf16>
    %15 = vector.shape_cast %14 : vector<1x1x64xbf16> to vector<1x64xbf16>
    %16 = arith.extf %15 : vector<1x64xbf16> to vector<1x64xf32>
    %17 = vector.broadcast %1 : f32 to vector<1x64xf32>
    %18 = arith.mulf %17, %16 : vector<1x64xf32>
    %19 = arith.addf %13, %18 : vector<1x64xf32>
    %c0_12 = arith.constant 0 : index
    %c0_13 = arith.constant 0 : index
    %20 = vector.load %arg11[%c0_12, %c0_13] : memref<1x64xf32, #tpu.memory_space<vmem>>, vector<1x64xf32>
    tpu.vector_store %arg11[%c0_12, %c0_13], %19 {strides = array<i32>} : memref<1x64xf32, #tpu.memory_space<vmem>>, vector<1x64xf32>,
    %c0_14 = arith.constant 0 : index
    %c0_15 = arith.constant 0 : index
    %21 = vector.load %arg12[%c0_14, %c0_15] : memref<64x128xf32, #tpu.memory_space<vmem>>, vector<64x128xf32>
    %c0_16 = arith.constant 0 : index
    %c0_17 = arith.constant 0 : index
    %c0_18 = arith.constant 0 : index
    %22 = vector.load %arg7[%c0_16, %c0_17, %c0_18] : memref<1x64x128xbf16, #tpu.memory_space<vmem>>, vector<1x64x128xbf16>
    %23 = vector.shape_cast %22 : vector<1x64x128xbf16> to vector<64x128xbf16>
    %24 = arith.extf %23 : vector<64x128xbf16> to vector<64x128xf32>
    %25 = vector.broadcast %1 : f32 to vector<64x128xf32>
    %26 = arith.mulf %25, %24 : vector<64x128xf32>
    %27 = arith.addf %21, %26 : vector<64x128xf32>
    %c0_19 = arith.constant 0 : index
    %c0_20 = arith.constant 0 : index
    %28 = vector.load %arg12[%c0_19, %c0_20] : memref<64x128xf32, #tpu.memory_space<vmem>>, vector<64x128xf32>
    tpu.vector_store %arg12[%c0_19, %c0_20], %27 {strides = array<i32>} : memref<64x128xf32, #tpu.memory_space<vmem>>, vector<64x128xf32>,
    %c0_21 = arith.constant 0 : index
    %c0_22 = arith.constant 0 : index
    %29 = vector.load %arg13[%c0_21, %c0_22] : memref<1x128xf32, #tpu.memory_space<vmem>>, vector<1x128xf32>
    %c0_23 = arith.constant 0 : index
    %c0_24 = arith.constant 0 : index
    %c0_25 = arith.constant 0 : index
    %30 = vector.load %arg8[%c0_23, %c0_24, %c0_25] : memref<1x1x128xbf16, #tpu.memory_space<vmem>>, vector<1x1x128xbf16>
    %31 = vector.shape_cast %30 : vector<1x1x128xbf16> to vector<1x128xbf16>
    %32 = arith.extf %31 : vector<1x128xbf16> to vector<1x128xf32>
    %33 = vector.broadcast %1 : f32 to vector<1x128xf32>
    %34 = arith.mulf %33, %32 : vector<1x128xf32>
    %35 = arith.addf %29, %34 : vector<1x128xf32>
    %c0_26 = arith.constant 0 : index
    %c0_27 = arith.constant 0 : index
    %36 = vector.load %arg13[%c0_26, %c0_27] : memref<1x128xf32, #tpu.memory_space<vmem>>, vector<1x128xf32>
    tpu.vector_store %arg13[%c0_26, %c0_27], %35 {strides = array<i32>} : memref<1x128xf32, #tpu.memory_space<vmem>>, vector<1x128xf32>,
    %c3_i32 = arith.constant 3 : i32
    %37 = arith.cmpi eq, %arg1, %c3_i32 : i32
    %38 = arith.extui %37 : i1 to i32
    %c0_i32_28 = arith.constant 0 : i32
    %39 = arith.cmpi ne, %38, %c0_i32_28 : i32
    scf.if %39 {
      %c0_29 = arith.constant 0 : index
      %c0_30 = arith.constant 0 : index
      %40 = vector.load %arg4[%c0_29, %c0_30] : memref<64x32xf32, #tpu.memory_space<vmem>>, vector<64x32xf32>
      %c0_31 = arith.constant 0 : index
      %c0_32 = arith.constant 0 : index
      %41 = vector.load %arg10[%c0_31, %c0_32] : memref<32x64xf32, #tpu.memory_space<vmem>>, vector<32x64xf32>
      %cst = arith.constant dense<0.000000e+00> : vector<64x64xf32>
      %42 = tpu.matmul %40, %41, %cst {dimension_numbers = #tpu.dot_dimension_numbers<[1], [0], [0], [1], [0, 0, 1, 1], [], []>} : vector<64x32xf32>, vector<32x64xf32>, vector<64x64xf32> -> vector<64x64xf32>
      %c0_33 = arith.constant 0 : index
      %c0_34 = arith.constant 0 : index
      %43 = vector.load %arg11[%c0_33, %c0_34] : memref<1x64xf32, #tpu.memory_space<vmem>>, vector<1x64xf32>
      %44 = vector.broadcast %43 : vector<1x64xf32> to vector<64x64xf32>
      %45 = arith.addf %42, %44 : vector<64x64xf32>
      %cst_35 = arith.constant 0.000000e+00 : f32
      %46 = vector.broadcast %cst_35 : f32 to vector<64x64xf32>
      %47 = arith.maximumf %45, %46 : vector<64x64xf32>
      %c0_36 = arith.constant 0 : index
      %c0_37 = arith.constant 0 : index
      %48 = vector.load %arg12[%c0_36, %c0_37] : memref<64x128xf32, #tpu.memory_space<vmem>>, vector<64x128xf32>
      %cst_38 = arith.constant dense<0.000000e+00> : vector<64x128xf32>
      %49 = tpu.matmul %47, %48, %cst_38 {dimension_numbers = #tpu.dot_dimension_numbers<[1], [0], [0], [1], [0, 0, 1, 1], [], []>} : vector<64x64xf32>, vector<64x128xf32>, vector<64x128xf32> -> vector<64x128xf32>
      %c0_39 = arith.constant 0 : index
      %c0_40 = arith.constant 0 : index
      %50 = vector.load %arg13[%c0_39, %c0_40] : memref<1x128xf32, #tpu.memory_space<vmem>>, vector<1x128xf32>
      %51 = vector.broadcast %50 : vector<1x128xf32> to vector<64x128xf32>
      %52 = arith.addf %49, %51 : vector<64x128xf32>
      %c0_41 = arith.constant 0 : index
      %c0_42 = arith.constant 0 : index
      %53 = vector.load %arg9[%c0_41, %c0_42] : memref<64x128xf32, #tpu.memory_space<vmem>>, vector<64x128xf32>
      tpu.vector_store %arg9[%c0_41, %c0_42], %52 {strides = array<i32>} : memref<64x128xf32, #tpu.memory_space<vmem>>, vector<64x128xf32>,
    } else {
    }
    return
  }
  func.func @transform_0(%arg0: i32, %arg1: i32, %arg2: memref<4xi32, #tpu.memory_space<smem>>) -> i32 {
    %c0_i32 = arith.constant 0 : i32
    %c0_i32_0 = arith.constant 0 : i32
    return %c0_i32 : i32
  }
  func.func @transform_1(%arg0: i32, %arg1: i32, %arg2: memref<4xi32, #tpu.memory_space<smem>>) -> (i32, i32) {
    %c0_i32 = arith.constant 0 : i32
    %c0_i32_0 = arith.constant 0 : i32
    return %arg0, %c0_i32 : i32, i32
  }
  func.func @transform_2(%arg0: i32, %arg1: i32, %arg2: memref<4xi32, #tpu.memory_space<smem>>) -> (i32, i32, i32) {
    %0 = arith.index_cast %arg1 : i32 to index
    %1 = memref.load %arg2[%0] : memref<4xi32, #tpu.memory_space<smem>>
    %c0_i32 = arith.constant 0 : i32
    %c0_i32_0 = arith.constant 0 : i32
    %c0_i32_1 = arith.constant 0 : i32
    return %1, %c0_i32, %c0_i32_0 : i32, i32, i32
  }
  func.func @transform_3(%arg0: i32, %arg1: i32, %arg2: memref<4xi32, #tpu.memory_space<smem>>) -> (i32, i32, i32) {
    %0 = arith.index_cast %arg1 : i32 to index
    %1 = memref.load %arg2[%0] : memref<4xi32, #tpu.memory_space<smem>>
    %c0_i32 = arith.constant 0 : i32
    %c0_i32_0 = arith.constant 0 : i32
    %c0_i32_1 = arith.constant 0 : i32
    return %1, %c0_i32, %c0_i32_0 : i32, i32, i32
  }
  func.func @transform_4(%arg0: i32, %arg1: i32, %arg2: memref<4xi32, #tpu.memory_space<smem>>) -> (i32, i32, i32) {
    %0 = arith.index_cast %arg1 : i32 to index
    %1 = memref.load %arg2[%0] : memref<4xi32, #tpu.memory_space<smem>>
    %c0_i32 = arith.constant 0 : i32
    %c0_i32_0 = arith.constant 0 : i32
    %c0_i32_1 = arith.constant 0 : i32
    return %1, %c0_i32, %c0_i32_0 : i32, i32, i32
  }
  func.func @transform_5(%arg0: i32, %arg1: i32, %arg2: memref<4xi32, #tpu.memory_space<smem>>) -> (i32, i32, i32) {
    %0 = arith.index_cast %arg1 : i32 to index
    %1 = memref.load %arg2[%0] : memref<4xi32, #tpu.memory_space<smem>>
    %c0_i32 = arith.constant 0 : i32
    %c0_i32_0 = arith.constant 0 : i32
    %c0_i32_1 = arith.constant 0 : i32
    return %1, %c0_i32, %c0_i32_0 : i32, i32, i32
  }
  func.func @transform_6(%arg0: i32, %arg1: i32, %arg2: memref<4xi32, #tpu.memory_space<smem>>) -> (i32, i32) {
    %c0_i32 = arith.constant 0 : i32
    %c0_i32_0 = arith.constant 0 : i32
    return %arg0, %c0_i32 : i32, i32
  }
}

</mosaic_0001>

<llo_original>
// kernel: merge_net_forward.1
$region0: #{merge_net_forward.1}
  #allocation0 [shape = 'u32[]', space=smem, size = 0x4, offset = 0x4, fixed_abs, tag = 'smem constant byte address 0x4 - core index']
  #allocation1 [shape = 'u32[144,128]{1,0:T(1,128)}', space=vmem, size = 0x12000, scoped, tag = 'internal scratch']
  #allocation2 [shape = 'f32[32,64]{1,0:T(8,128)}', space=vmem, size = 0x4000, scoped, tag = 'scratch operand']
  #allocation3 [shape = 'f32[1,64]{1,0:T(1,128)}', space=vmem, size = 0x200, scoped, tag = 'scratch operand']
  #allocation4 [shape = 'f32[64,128]{1,0:T(8,128)}', space=vmem, size = 0x8000, scoped, tag = 'scratch operand']
  #allocation5 [shape = 'f32[1,128]{1,0:T(1,128)}', space=vmem, size = 0x200, scoped, tag = 'scratch operand']
  #allocation6 [shape = 's32[1]{0}', space=sflag, size = 0x4, scoped, tag = 'scoped memory for merge_net_forward.1']
  #allocation7 [shape = 'u8[512]{0}', space=smem, size = 0x200, scoped, tag = 'prefetched SMEM operand 0']
  %s0 = inlined_call_operand.vmem [shape: s32[4], index: 0, kind: input, shape index: {}]
  %s1 = inlined_call_operand.vmem [shape: f32[4], index: 1, kind: input, shape index: {}]
  %s2 = inlined_call_operand.vmem [shape: f32[128,32], index: 2, kind: input, shape index: {}]
  %s3 = inlined_call_operand.vmem [shape: bf16[8,32,64], index: 3, kind: input, shape index: {}]
  %s4 = inlined_call_operand.vmem [shape: bf16[8,1,64], index: 4, kind: input, shape index: {}]
  %s5 = inlined_call_operand.hbm [shape: bf16[8,64,128], index: 5, kind: input, shape index: {}]
  %s6 = inlined_call_operand.vmem [shape: bf16[8,1,128], index: 6, kind: input, shape index: {}]
  %s7 = inlined_call_operand.vmem [shape: f32[128,128], index: 7, kind: output, shape index: {}]
  %s8 = sld [smem:[#allocation0]]
  $region73: #{merge_net_forward.1} parent=0
    _
  %s10 = ssub.s32 1, %s8
  %s11 = scalar_select 0, %s10, %s8
  %s12 = sshll.u32 %s0, 4
  %s13 = int_to_ptr.vmem [resolvable:$true] %s12
  %15 = dma.vmem_to_smem %s13, 16, [#allocation7], [#allocation6]
  %16 = dma.done [#allocation6], 16
  %17 = sfence
  $region1: #{merge_net_forward.1} parent=0
    #allocation8 [shape = 'u8[512]{0}', space=smem, size = 0x200, scoped, tag = 'input window, operand 1, single buffered']
    #allocation9 [shape = 's32[2]{0}', space=sflag, size = 0x8, scoped, tag = 'scoped memory for merge_net_forward.1']
    #allocation10 [shape = 's32[2]{0}', space=sflag, size = 0x8, scoped, tag = 'scoped memory for merge_net_forward.1']
    #allocation11 [shape = 'u8[32768]{0}', space=vmem, size = 0x8000, scoped, tag = 'input window, operand 5']
    %18 = vsyncpa [#allocation10], 0
    %19 = vsyncpa [#allocation9], 0
    %s20 = scalar_lea.sflag [#allocation9], 1
    %21 = vsyncpa %s20, 0
    loop: start=0, step=1, limit=10
    $region2: #{merge_net_forward.1} parent=1 // loop_pre_header
      _
    $region3: #{merge_net_forward.1} parent=1 // loop_header
      %s23 = sphi 0, %s27
      %p24 = scmp.ge.s32.totalorder %s23, 10
      %s30 = sphi 0, %s42
      %s31 = sphi 0, %s38
      %s32 = sphi 0, %s30
      %s33 = sphi 0, %s31
      %s34 = sphi 0, %s32
      %s35 = sphi 0, %s33
      %s43 = sphi 0, %s43
      %s45 = sphi 0, %s43
      %s46 = sphi 0, %s45
      %s60 = sphi 0, %s46
      %s66 = sphi 0, %s68
      %s69 = sphi 0, %s66
      %s70 = sphi 0, %s69
      %s86 = sphi 0, %s70
      %s94 = sphi 0, %s96
      %s97 = sphi 0, %s94
      %s98 = sphi 0, %s97
      %s114 = sphi 0, %s98
      %s122 = sphi 0, %s124
      %s125 = sphi 0, %s122
      %s126 = sphi 0, %s125
      %s142 = sphi 0, %s126
      %s150 = sphi 0, %s152
      %s153 = sphi 0, %s150
      %s154 = sphi 0, %s153
      %s170 = sphi 0, %s154
      %s178 = sphi 0, %s180
      %s181 = sphi 0, %s178
      %s182 = sphi 0, %s181
      %s198 = sphi 0, %s182
      %s204 = sphi 0, %s206
      %s207 = sphi 0, %s204
      %s208 = sphi 0, %s207
      %s224 = sphi 0, %s208
    $region4: #{merge_net_forward.1} parent=1 // loop_header_branch
      %26 = sbr.rel (%p24) target = $region8
    $region5: #{merge_net_forward.1} parent=1 // loop_body
      %s28 = ssub.s32 %s23, 1
      %s29 = ssub.s32 %s23, 2
      %s36 = sadd.s32 1, %s31
      %p37 = scmp.ge.s32.totalorder %s36, 4
      %s38 = scalar_select %p37, 0, %s36
      %s39 = sadd.s32 1, %s30
      %s40 = scalar_select %p37, %s39, %s30
      %p41 = scmp.ge.s32.totalorder %s40, 2
      %s42 = scalar_select %p41, 0, %s40
      %s44 = sadd.s32 %s43, 1
      %p47 = scmp.eq.s32.totalorder %s23, 7
      %p48 = scmp.ne.s32.totalorder %s43, %s45
      %p49 = scmp.eq.s32.totalorder %s23, 0
      %p50 = por %p48, %p49
      %p51 = scmp.ne.s32.totalorder %s43, %s45
      %p52 = scmp.eq.s32.totalorder %s28, 7
      %p53 = por %p51, %p52
      %p54 = scmp.ne.s32.totalorder %s45, %s46
      %p55 = scmp.eq.s32.totalorder %s28, 0
      %p56 = por %p54, %p55
      %p57 = scmp.ne.s32.totalorder %s45, %s46
      %p58 = scmp.eq.s32.totalorder %s29, 7
      %p59 = por %p57, %p58
      %p61 = scmp.ne.s32.totalorder %s46, %s60
      %p62 = scmp.eq.s32.totalorder %s29, 0
      %p63 = por %p61, %p62
      %s64 = ssub.s32 %s30, %s42
      %p65 = scmp.eq.s32.totalorder %s64, 0
      %s67 = sadd.s32 %s66, 1
      %s68 = scalar_select %p65, %s66, %s67
      %p71 = pneg %p65
      %p72 = scmp.eq.s32.totalorder %s23, 7
      %p73 = por %p71, %p72
      %p74 = scmp.ne.s32.totalorder %s66, %s69
      %p75 = scmp.eq.s32.totalorder %s23, 0
      %p76 = por %p74, %p75
      %p77 = scmp.ne.s32.totalorder %s66, %s69
      %p78 = scmp.eq.s32.totalorder %s28, 7
      %p79 = por %p77, %p78
      %p80 = scmp.ne.s32.totalorder %s69, %s70
      %p81 = scmp.eq.s32.totalorder %s28, 0
      %p82 = por %p80, %p81
      %p83 = scmp.ne.s32.totalorder %s69, %s70
      %p84 = scmp.eq.s32.totalorder %s29, 7
      %p85 = por %p83, %p84
      %p87 = scmp.ne.s32.totalorder %s70, %s86
      %p88 = scmp.eq.s32.totalorder %s29, 0
      %p89 = por %p87, %p88
      %s90 = sld [smem:[#allocation7 + %s31]]
      %s91 = sld [smem:[#allocation7 + %s38]]
      %s92 = ssub.s32 %s90, %s91
      %p93 = scmp.eq.s32.totalorder %s92, 0
      %s95 = sadd.s32 %s94, 1
      %s96 = scalar_select %p93, %s94, %s95
      %p99 = pneg %p93
      %p100 = scmp.eq.s32.totalorder %s23, 7
      %p101 = por %p99, %p100
      %p102 = scmp.ne.s32.totalorder %s94, %s97
      %p103 = scmp.eq.s32.totalorder %s23, 0
      %p104 = por %p102, %p103
      %p105 = scmp.ne.s32.totalorder %s94, %s97
      %p106 = scmp.eq.s32.totalorder %s28, 7
      %p107 = por %p105, %p106
      %p108 = scmp.ne.s32.totalorder %s97, %s98
      %p109 = scmp.eq.s32.totalorder %s28, 0
      %p110 = por %p108, %p109
      %p111 = scmp.ne.s32.totalorder %s97, %s98
      %p112 = scmp.eq.s32.totalorder %s29, 7
      %p113 = por %p111, %p112
      %p115 = scmp.ne.s32.totalorder %s98, %s114
      %p116 = scmp.eq.s32.totalorder %s29, 0
      %p117 = por %p115, %p116
      %s118 = sld [smem:[#allocation7 + %s31]]
      %s119 = sld [smem:[#allocation7 + %s38]]
      %s120 = ssub.s32 %s118, %s119
      %p121 = scmp.eq.s32.totalorder %s120, 0
      %s123 = sadd.s32 %s122, 1
      %s124 = scalar_select %p121, %s122, %s123
      %p127 = pneg %p121
      %p128 = scmp.eq.s32.totalorder %s23, 7
      %p129 = por %p127, %p128
      %p130 = scmp.ne.s32.totalorder %s122, %s125
      %p131 = scmp.eq.s32.totalorder %s23, 0
      %p132 = por %p130, %p131
      %p133 = scmp.ne.s32.totalorder %s122, %s125
      %p134 = scmp.eq.s32.totalorder %s28, 7
      %p135 = por %p133, %p134
      %p136 = scmp.ne.s32.totalorder %s125, %s126
      %p137 = scmp.eq.s32.totalorder %s28, 0
      %p138 = por %p136, %p137
      %p139 = scmp.ne.s32.totalorder %s125, %s126
      %p140 = scmp.eq.s32.totalorder %s29, 7
      %p141 = por %p139, %p140
      %p143 = scmp.ne.s32.totalorder %s126, %s142
      %p144 = scmp.eq.s32.totalorder %s29, 0
      %p145 = por %p143, %p144
      %s146 = sld [smem:[#allocation7 + %s31]]
      %s147 = sld [smem:[#allocation7 + %s38]]
      %s148 = ssub.s32 %s146, %s147
      %p149 = scmp.eq.s32.totalorder %s148, 0
      %s151 = sadd.s32 %s150, 1
      %s152 = scalar_select %p149, %s150, %s151
      %p155 = pneg %p149
      %p156 = scmp.eq.s32.totalorder %s23, 7
      %p157 = por %p155, %p156
      %p158 = scmp.ne.s32.totalorder %s150, %s153
      %p159 = scmp.eq.s32.totalorder %s23, 0
      %p160 = por %p158, %p159
      %p161 = scmp.ne.s32.totalorder %s150, %s153
      %p162 = scmp.eq.s32.totalorder %s28, 7
      %p163 = por %p161, %p162
      %p164 = scmp.ne.s32.totalorder %s153, %s154
      %p165 = scmp.eq.s32.totalorder %s28, 0
      %p166 = por %p164, %p165
      %p167 = scmp.ne.s32.totalorder %s153, %s154
      %p168 = scmp.eq.s32.totalorder %s29, 7
      %p169 = por %p167, %p168
      %p171 = scmp.ne.s32.totalorder %s154, %s170
      %p172 = scmp.eq.s32.totalorder %s29, 0
      %p173 = por %p171, %p172
      %s174 = sld [smem:[#allocation7 + %s31]]
      %s175 = sld [smem:[#allocation7 + %s38]]
      %s176 = ssub.s32 %s174, %s175
      %p177 = scmp.eq.s32.totalorder %s176, 0
      %s179 = sadd.s32 %s178, 1
      %s180 = scalar_select %p177, %s178, %s179
      %p183 = pneg %p177
      %p184 = scmp.eq.s32.totalorder %s23, 7
      %p185 = por %p183, %p184
      %p186 = scmp.ne.s32.totalorder %s178, %s181
      %p187 = scmp.eq.s32.totalorder %s23, 0
      %p188 = por %p186, %p187
      %p189 = scmp.ne.s32.totalorder %s178, %s181
      %p190 = scmp.eq.s32.totalorder %s28, 7
      %p191 = por %p189, %p190
      %p192 = scmp.ne.s32.totalorder %s181, %s182
      %p193 = scmp.eq.s32.totalorder %s28, 0
      %p194 = por %p192, %p193
      %p195 = scmp.ne.s32.totalorder %s181, %s182
      %p196 = scmp.eq.s32.totalorder %s29, 7
      %p197 = por %p195, %p196
      %p199 = scmp.ne.s32.totalorder %s182, %s198
      %p200 = scmp.eq.s32.totalorder %s29, 0
      %p201 = por %p199, %p200
      %s202 = ssub.s32 %s30, %s42
      %p203 = scmp.eq.s32.totalorder %s202, 0
      %s205 = sadd.s32 %s204, 1
      %s206 = scalar_select %p203, %s204, %s205
      %p209 = pneg %p203
      %p210 = scmp.eq.s32.totalorder %s23, 7
      %p211 = por %p209, %p210
      %p212 = scmp.ne.s32.totalorder %s204, %s207
      %p213 = scmp.eq.s32.totalorder %s23, 0
      %p214 = por %p212, %p213
      %p215 = scmp.ne.s32.totalorder %s204, %s207
      %p216 = scmp.eq.s32.totalorder %s28, 7
      %p217 = por %p215, %p216
      %p218 = scmp.ne.s32.totalorder %s207, %s208
      %p219 = scmp.eq.s32.totalorder %s28, 0
      %p220 = por %p218, %p219
      %p221 = scmp.ne.s32.totalorder %s207, %s208
      %p222 = scmp.eq.s32.totalorder %s29, 7
      %p223 = por %p221, %p222
      %p225 = scmp.ne.s32.totalorder %s208, %s224
      %p226 = scmp.eq.s32.totalorder %s29, 0
      %p227 = por %p225, %p226
      %p228 = scmp.le.s32.totalorder 1, %s23
      %p229 = scmp.lt.s32.totalorder %s23, 9
      %p230 = pnand %p228, %p229
      %p231 = pneg %p230
      // Predicated region
      $region9: #{merge_net_forward.1} parent=5 // pred_check
        _
      $region10: #{merge_net_forward.1} parent=5 // pred_check_branch
        %233 = sbr.rel (%p230) target = $region12
      $region11: #{merge_net_forward.1} parent=5 // pred_region
        %s234 = ssub.s32 %s23, 1
        // Predicated region
        $region13: #{merge_net_forward.1} parent=11 // pred_check
          %p235 = pneg %p56
        $region14: #{merge_net_forward.1} parent=11 // pred_check_branch
          %237 = sbr.rel (%p235) target = $region16
        $region15: #{merge_net_forward.1} parent=11 // pred_region
          %s239 = ssub.s32 16, 16
          %240 = vsyncadd [#allocation10], %s239
          %s242 = sshll.u32 %s1, 4
          %s243 = int_to_ptr.vmem [resolvable:$true] %s242
          %245 = dma.vmem_to_smem %s243, 16, [#allocation8], [#allocation10]
        $region16: #{merge_net_forward.1} parent=11 // pred_fallthru
          _
      $region12: #{merge_net_forward.1} parent=5 // pred_fallthru
        _
      %p246 = scmp.lt.s32.totalorder %s23, 8
      // Predicated region
      $region17: #{merge_net_forward.1} parent=5 // pred_check
        %p247 = pneg %p246
      $region18: #{merge_net_forward.1} parent=5 // pred_check_branch
        %249 = sbr.rel (%p247) target = $region20
      $region19: #{merge_net_forward.1} parent=5 // pred_region
        // Predicated region
        $region21: #{merge_net_forward.1} parent=19 // pred_check
          %p250 = pneg %p76
        $region22: #{merge_net_forward.1} parent=19 // pred_check_branch
          %252 = sbr.rel (%p250) target = $region24
        $region23: #{merge_net_forward.1} parent=19 // pred_region
          %s253 = smul.u32 8, %s30
          %p254 = scmp.lt.s32.totalorder %s253, 15
          %s255 = scalar_select %p254, %s253, 15
          %s256 = smul.addr %s255, 8
          %s257 = scalar_lea.vmem %s2, %s256
          %s258 = smul.u32 8, %s30
        $region24: #{merge_net_forward.1} parent=19 // pred_fallthru
          _
        // Predicated region
        $region25: #{merge_net_forward.1} parent=19 // pred_check
          %p259 = pneg %p104
        $region26: #{merge_net_forward.1} parent=19 // pred_check_branch
          %261 = sbr.rel (%p259) target = $region28
        $region27: #{merge_net_forward.1} parent=19 // pred_region
          %s262 = sld [smem:[#allocation7 + %s31]]
          %p263 = scmp.lt.s32.totalorder %s262, 7
          %s264 = scalar_select %p263, %s262, 7
          %s265 = smul.addr %s264, 4
          %s266 = smul.addr %s265, 4
          %s267 = scalar_lea.vmem %s3, %s266
          %s268 = sld [smem:[#allocation7 + %s31]]
        $region28: #{merge_net_forward.1} parent=19 // pred_fallthru
          _
        // Predicated region
        $region29: #{merge_net_forward.1} parent=19 // pred_check
          %p269 = pneg %p132
        $region30: #{merge_net_forward.1} parent=19 // pred_check_branch
          %271 = sbr.rel (%p269) target = $region32
        $region31: #{merge_net_forward.1} parent=19 // pred_region
          %s272 = sld [smem:[#allocation7 + %s31]]
          %p273 = scmp.lt.s32.totalorder %s272, 7
          %s274 = scalar_select %p273, %s272, 7
          %s275 = scalar_lea.vmem %s4, %s274
          %s276 = sld [smem:[#allocation7 + %s31]]
        $region32: #{merge_net_forward.1} parent=19 // pred_fallthru
          _
        // Predicated region
        $region33: #{merge_net_forward.1} parent=19 // pred_check
          %p277 = pneg %p160
        $region34: #{merge_net_forward.1} parent=19 // pred_check_branch
          %279 = sbr.rel (%p277) target = $region36
        $region35: #{merge_net_forward.1} parent=19 // pred_region
          %s280 = sand.u32 %s150, 1
          %s281 = scalar_lea.sflag [#allocation9], %s280
          %s282 = sand.u32 %s150, 1
          %s283 = smul.addr %s282, 32
          %s284 = scalar_lea.vmem [#allocation11], %s283
          %s285 = sld [smem:[#allocation7 + %s31]]
          %s287 = ssub.s32 512, 512
          %288 = vsyncadd %s281, %s287
          %s289 = smul.addr %s285, 8
          %s290 = smul.addr %s289, 64
          %s291 = scalar_lea.hbm %s5, %s290
          %s292 = sshll.u32 %s284, 4
          %s293 = int_to_ptr.vmem [resolvable:$true] %s292
          %298 = dma.hbm_to_vmem [thread:$0]  %s291, 512, %s293, %s281, 64, 64, 4
        $region36: #{merge_net_forward.1} parent=19 // pred_fallthru
          _
        // Predicated region
        $region37: #{merge_net_forward.1} parent=19 // pred_check
          %p299 = pneg %p188
        $region38: #{merge_net_forward.1} parent=19 // pred_check_branch
          %301 = sbr.rel (%p299) target = $region40
        $region39: #{merge_net_forward.1} parent=19 // pred_region
          %s302 = sld [smem:[#allocation7 + %s31]]
          %p303 = scmp.lt.s32.totalorder %s302, 7
          %s304 = scalar_select %p303, %s302, 7
          %s305 = scalar_lea.vmem %s6, %s304
          %s306 = sld [smem:[#allocation7 + %s31]]
        $region40: #{merge_net_forward.1} parent=19 // pred_fallthru
          _
      $region20: #{merge_net_forward.1} parent=5 // pred_fallthru
        _
      %p307 = scmp.le.s32.totalorder 1, %s23
      %p308 = scmp.lt.s32.totalorder %s23, 9
      %p309 = pnand %p307, %p308
      %p310 = pneg %p309
      // Predicated region
      $region41: #{merge_net_forward.1} parent=5 // pred_check
        _
      $region42: #{merge_net_forward.1} parent=5 // pred_check_branch
        %312 = sbr.rel (%p309) target = $region44
      $region43: #{merge_net_forward.1} parent=5 // pred_region
        %s313 = ssub.s32 %s23, 1
        // Predicated region
        $region45: #{merge_net_forward.1} parent=43 // pred_check
          %p314 = pneg %p56
        $region46: #{merge_net_forward.1} parent=43 // pred_check_branch
          %316 = sbr.rel (%p314) target = $region48
        $region47: #{merge_net_forward.1} parent=43 // pred_region
          %317 = dma.done [#allocation10], 16
        $region48: #{merge_net_forward.1} parent=43 // pred_fallthru
          _
        %s318 = sand.u32 %s153, 1
        %s319 = scalar_lea.sflag [#allocation9], %s318
        %s320 = sand.u32 %s153, 1
        %s321 = smul.addr %s320, 32
        %s322 = scalar_lea.vmem [#allocation11], %s321
        // Predicated region
        $region49: #{merge_net_forward.1} parent=43 // pred_check
          %p323 = pneg %p166
        $region50: #{merge_net_forward.1} parent=43 // pred_check_branch
          %325 = sbr.rel (%p323) target = $region52
        $region51: #{merge_net_forward.1} parent=43 // pred_region
          %326 = dma.done %s319, 512
        $region52: #{merge_net_forward.1} parent=43 // pred_fallthru
          _
        %327 = sfence
        %p328 = pneg %p56
        %p329 = pneg %p53
        %s330 = smul.u32 8, %s32
        %p331 = scmp.lt.s32.totalorder %s330, 15
        %s332 = scalar_select %p331, %s330, 15
        %s333 = smul.addr %s332, 8
        %s334 = scalar_lea.vmem %s2, %s333
        %p335 = pneg %p82
        %p336 = pneg %p79
        %s337 = sld [smem:[#allocation7 + %s33]]
        %p338 = scmp.lt.s32.totalorder %s337, 7
        %s339 = scalar_select %p338, %s337, 7
        %s340 = smul.addr %s339, 4
        %s341 = smul.addr %s340, 4
        %s342 = scalar_lea.vmem %s3, %s341
        %p343 = pneg %p110
        %p344 = pneg %p107
        %s345 = sld [smem:[#allocation7 + %s33]]
        %p346 = scmp.lt.s32.totalorder %s345, 7
        %s347 = scalar_select %p346, %s345, 7
        %s348 = scalar_lea.vmem %s4, %s347
        %p349 = pneg %p138
        %p350 = pneg %p135
        %s351 = sand.u32 %s153, 1
        %s352 = scalar_lea.sflag [#allocation9], %s351
        %s353 = sand.u32 %s153, 1
        %s354 = smul.addr %s353, 32
        %s355 = scalar_lea.vmem [#allocation11], %s354
        %p356 = pneg %p166
        %p357 = pneg %p163
        %s358 = sld [smem:[#allocation7 + %s33]]
        %p359 = scmp.lt.s32.totalorder %s358, 7
        %s360 = scalar_select %p359, %s358, 7
        %s361 = scalar_lea.vmem %s6, %s360
        %p362 = pneg %p194
        %p363 = pneg %p191
        %p364 = pneg %p220
        %p365 = pneg %p217
        %s366 = smul.u32 8, %s32
        %p367 = scmp.lt.s32.totalorder %s366, 15
        %s368 = scalar_select %p367, %s366, 15
        %s369 = smul.addr %s368, 8
        %s370 = scalar_lea.vmem %s7, %s369
        %s371 = smul.u32 8, %s32
        %p372 = scmp.lt.s32.totalorder %s371, 15
        %s373 = scalar_select %p372, %s371, 15
        %s374 = smul.addr %s373, 8
        %s375 = scalar_lea.vmem %s2, %s374
        %s376 = smul.u32 8, %s32
        %s377 = sld [smem:[#allocation7 + %s33]]
        %p378 = scmp.lt.s32.totalorder %s377, 7
        %s379 = scalar_select %p378, %s377, 7
        %s380 = smul.addr %s379, 4
        %s381 = smul.addr %s380, 4
        %s382 = scalar_lea.vmem %s3, %s381
        %s383 = sld [smem:[#allocation7 + %s33]]
        %s384 = sld [smem:[#allocation7 + %s33]]
        %p385 = scmp.lt.s32.totalorder %s384, 7
        %s386 = scalar_select %p385, %s384, 7
        %s387 = scalar_lea.vmem %s4, %s386
        %s388 = sld [smem:[#allocation7 + %s33]]
        %s389 = sld [smem:[#allocation7 + %s33]]
        %s390 = sld [smem:[#allocation7 + %s33]]
        %p391 = scmp.lt.s32.totalorder %s390, 7
        %s392 = scalar_select %p391, %s390, 7
        %s393 = scalar_lea.vmem %s6, %s392
        %s394 = sld [smem:[#allocation7 + %s33]]
        %s395 = smul.u32 8, %s32
        %p396 = scmp.lt.s32.totalorder %s395, 15
        %s397 = scalar_select %p396, %s395, 15
        %s398 = smul.addr %s397, 8
        %s399 = scalar_lea.vmem %s7, %s398
        %s400 = smul.u32 8, %s32
        %s401 = sld [smem:[#allocation8 + %s33]]
        %p402 = scmp.eq.s32.totalorder %s33, 0
        // Predicated region
        $region53: #{merge_net_forward.1} parent=43 // pred_check
          %p403 = pneg %p402
        $region54: #{merge_net_forward.1} parent=43 // pred_check_branch
          %405 = sbr.rel (%p403) target = $region56
        $region55: #{merge_net_forward.1} parent=43 // pred_region
          %vm406 = vcmask 523264
          %407 = vst.msk [vmem:[#allocation2] sm:$0xff] %vm406, 0.0
          %408 = vst.msk [vmem:[#allocation2 + $0x8] sm:$0xff] %vm406, 0.0
          %409 = vst.msk [vmem:[#allocation2 + $0x10] sm:$0xff] %vm406, 0.0
          %410 = vst.msk [vmem:[#allocation2 + $0x18] sm:$0xff] %vm406, 0.0
          %vm411 = vcmask 516096
          %412 = vst.msk [vmem:[#allocation3] sm:$0x1] %vm411, 0.0
          %413 = vst [vmem:[#allocation4] sm:$0xff] 0.0
          %414 = vst [vmem:[#allocation4 + $0x8] sm:$0xff] 0.0
          %415 = vst [vmem:[#allocation4 + $0x10] sm:$0xff] 0.0
          %416 = vst [vmem:[#allocation4 + $0x18] sm:$0xff] 0.0
          %417 = vst [vmem:[#allocation4 + $0x20] sm:$0xff] 0.0
          %418 = vst [vmem:[#allocation4 + $0x28] sm:$0xff] 0.0
          %419 = vst [vmem:[#allocation4 + $0x30] sm:$0xff] 0.0
          %420 = vst [vmem:[#allocation4 + $0x38] sm:$0xff] 0.0
          %421 = vst [vmem:[#allocation5] sm:$0x1] 0.0
        $region56: #{merge_net_forward.1} parent=43 // pred_fallthru
          _
        %v422 = vld [vmem:[#allocation2] sm:$0xff]
        %v423 = vld [vmem:[#allocation2 + $0x8] sm:$0xff]
        %v424 = vld [vmem:[#allocation2 + $0x10] sm:$0xff]
        %v425 = vld [vmem:[#allocation2 + $0x18] sm:$0xff]
        %v426 = vld [vmem:[%s382] sm:$0xf]
        %v427 = vld [vmem:[%s382 + $0x4] sm:$0xf]
        %v428 = vld [vmem:[%s382 + $0x8] sm:$0xf]
        %v429 = vld [vmem:[%s382 + $0xc] sm:$0xf]
        %v430 = vunpack.c.l.bf16 %v426
        %v431 = vunpack.c.l.bf16 %v427
        %v432 = vunpack.c.l.bf16 %v428
        %v433 = vunpack.c.l.bf16 %v429
        %v434 = vstv %s401
        %v435 = vmul.f32 %v434, %v430
        %v436 = vmul.f32 %v434, %v431
        %v437 = vmul.f32 %v434, %v432
        %v438 = vmul.f32 %v434, %v433
        %v439 = vadd.f32 %v422, %v435
        %v440 = vadd.f32 %v423, %v436
        %v441 = vadd.f32 %v424, %v437
        %v442 = vadd.f32 %v425, %v438
        %vm443 = vcmask 523264
        %444 = vst.msk [vmem:[#allocation2] sm:$0xff] %vm443, %v439
        %445 = vst.msk [vmem:[#allocation2 + $0x8] sm:$0xff] %vm443, %v440
        %446 = vst.msk [vmem:[#allocation2 + $0x10] sm:$0xff] %vm443, %v441
        %447 = vst.msk [vmem:[#allocation2 + $0x18] sm:$0xff] %vm443, %v442
        %v448 = vld [vmem:[#allocation3] sm:$0x1]
        %v449 = vld [vmem:[%s387] sm:$0x1]
        %v450 = vunpack.c.l.bf16 %v449
        %v451 = vmul.f32 %v434, %v450
        %v452 = vadd.f32 %v448, %v451
        %vm453 = vcmask 516096
        %454 = vst.msk [vmem:[#allocation3] sm:$0x1] %vm453, %v452
        %v455 = vld [vmem:[#allocation4] sm:$0xff]
        %v456 = vld [vmem:[#allocation4 + $0x8] sm:$0xff]
        %v457 = vld [vmem:[#allocation4 + $0x10] sm:$0xff]
        %v458 = vld [vmem:[#allocation4 + $0x18] sm:$0xff]
        %v459 = vld [vmem:[#allocation4 + $0x20] sm:$0xff]
        %v460 = vld [vmem:[#allocation4 + $0x28] sm:$0xff]
        %v461 = vld [vmem:[#allocation4 + $0x30] sm:$0xff]
        %v462 = vld [vmem:[#allocation4 + $0x38] sm:$0xff]
        %v463 = vld [vmem:[%s322] sm:$0xf]
        %v464 = vld [vmem:[%s322 + $0x4] sm:$0xf]
        %v465 = vld [vmem:[%s322 + $0x8] sm:$0xf]
        %v466 = vld [vmem:[%s322 + $0xc] sm:$0xf]
        %v467 = vld [vmem:[%s322 + $0x10] sm:$0xf]
        %v468 = vld [vmem:[%s322 + $0x14] sm:$0xf]
        %v469 = vld [vmem:[%s322 + $0x18] sm:$0xf]
        %v470 = vld [vmem:[%s322 + $0x1c] sm:$0xf]
        %v471 = vunpack.c.l.bf16 %v463
        %v472 = vunpack.c.l.bf16 %v464
        %v473 = vunpack.c.l.bf16 %v465
        %v474 = vunpack.c.l.bf16 %v466
        %v475 = vunpack.c.l.bf16 %v467
        %v476 = vunpack.c.l.bf16 %v468
        %v477 = vunpack.c.l.bf16 %v469
        %v478 = vunpack.c.l.bf16 %v470
        %v479 = vmul.f32 %v434, %v471
        %v480 = vmul.f32 %v434, %v472
        %v481 = vmul.f32 %v434, %v473
        %v482 = vmul.f32 %v434, %v474
        %v483 = vmul.f32 %v434, %v475
        %v484 = vmul.f32 %v434, %v476
        %v485 = vmul.f32 %v434, %v477
        %v486 = vmul.f32 %v434, %v478
        %v487 = vadd.f32 %v455, %v479
        %v488 = vadd.f32 %v456, %v480
        %v489 = vadd.f32 %v457, %v481
        %v490 = vadd.f32 %v458, %v482
        %v491 = vadd.f32 %v459, %v483
        %v492 = vadd.f32 %v460, %v484
        %v493 = vadd.f32 %v461, %v485
        %v494 = vadd.f32 %v462, %v486
        %495 = vst [vmem:[#allocation4] sm:$0xff] %v487
        %496 = vst [vmem:[#allocation4 + $0x8] sm:$0xff] %v488
        %497 = vst [vmem:[#allocation4 + $0x10] sm:$0xff] %v489
        %498 = vst [vmem:[#allocation4 + $0x18] sm:$0xff] %v490
        %499 = vst [vmem:[#allocation4 + $0x20] sm:$0xff] %v491
        %500 = vst [vmem:[#allocation4 + $0x28] sm:$0xff] %v492
        %501 = vst [vmem:[#allocation4 + $0x30] sm:$0xff] %v493
        %502 = vst [vmem:[#allocation4 + $0x38] sm:$0xff] %v494
        %v503 = vld [vmem:[#allocation5] sm:$0x1]
        %v504 = vld [vmem:[%s393] sm:$0x1]
        %v505 = vunpack.c.l.bf16 %v504
        %v506 = vmul.f32 %v434, %v505
        %v507 = vadd.f32 %v503, %v506
        %508 = vst [vmem:[#allocation5] sm:$0x1] %v507
        %p509 = scmp.eq.s32.totalorder %s33, 3
        // Predicated region
        $region57: #{merge_net_forward.1} parent=43 // pred_check
          %p510 = pneg %p509
        $region58: #{merge_net_forward.1} parent=43 // pred_check_branch
          %512 = sbr.rel (%p510) target = $region60
        $region59: #{merge_net_forward.1} parent=43 // pred_region
          %v513 = vld [vmem:[%s375] sm:$0xff]
          %v514 = vld [vmem:[%s375 + $0x8] sm:$0xff]
          %v515 = vld [vmem:[%s375 + $0x10] sm:$0xff]
          %v516 = vld [vmem:[%s375 + $0x18] sm:$0xff]
          %v517 = vld [vmem:[%s375 + $0x20] sm:$0xff]
          %v518 = vld [vmem:[%s375 + $0x28] sm:$0xff]
          %v519 = vld [vmem:[%s375 + $0x30] sm:$0xff]
          %v520 = vld [vmem:[%s375 + $0x38] sm:$0xff]
          %v521 = vld [vmem:[#allocation2] sm:$0xff]
          %v522 = vld [vmem:[#allocation2 + $0x8] sm:$0xff]
          %v523 = vld [vmem:[#allocation2 + $0x10] sm:$0xff]
          %v524 = vld [vmem:[#allocation2 + $0x18] sm:$0xff]
          %v525 = vld [vmem:[#allocation3] sm:$0x1]
          %v527 = vlaneseq
          %v528 = vshrl.u32 %v527, 7
          %v529 = vsub.s32 0, %v528
          %v530 = vrot.slane %v525, %v529
          %vm532 = vcmask 261120
          %v534 = vsel %vm532, %v513, 0
          %v537 = vsel %vm532, %v514, 0
          %v540 = vsel %vm532, %v515, 0
          %v543 = vsel %vm532, %v516, 0
          %v546 = vsel %vm532, %v517, 0
          %v549 = vsel %vm532, %v518, 0
          %v552 = vsel %vm532, %v519, 0
          %v555 = vsel %vm532, %v520, 0
          %557 = vmatprep.subr.mxu0 0.0
          %558 = vmatpush1.msra.mxu0 %v521
          %559 = vmatprep.subr.mxu0 0.0
          %560 = vmatpush1.msra.mxu0 %v522
          %561 = vmatprep.subr.mxu0 0.0
          %562 = vmatpush1.msra.mxu0 %v523
          %563 = vmatprep.subr.mxu0 0.0
          %564 = vmatpush1.msra.mxu0 %v524
          %565 = vmatprep.subr.mxu0 0.0
          %566 = vmatpush1.msra.mxu0 0.0
          %567 = vmatprep.subr.mxu0 0.0
          %568 = vmatpush1.msra.mxu0 0.0
          %569 = vmatprep.subr.mxu0 0.0
          %570 = vmatpush1.msra.mxu0 0.0
          %571 = vmatprep.subr.mxu0 0.0
          %572 = vmatpush1.msra.mxu0 0.0
          %573 = vmatprep.subr.mxu0 0.0
          %574 = vmatpush1.msra.mxu0 0.0
          %575 = vmatprep.subr.mxu0 0.0
          %576 = vmatpush1.msra.mxu0 0.0
          %577 = vmatprep.subr.mxu0 0.0
          %578 = vmatpush1.msra.mxu0 0.0
          %579 = vmatprep.subr.mxu0 0.0
          %580 = vmatpush1.msra.mxu0 0.0
          %581 = vmatprep.subr.mxu0 0.0
          %582 = vmatpush1.msra.mxu0 0.0
          %583 = vmatprep.subr.mxu0 0.0
          %584 = vmatpush1.msra.mxu0 0.0
          %585 = vmatprep.subr.mxu0 0.0
          %586 = vmatpush1.msra.mxu0 0.0
          %587 = vmatprep.subr.mxu0 0.0
          %588 = vmatpush1.msra.mxu0 0.0
          %589 = vmatprep.subr.mxu0 0.0
          %590 = vmatpush1.msra.mxu0 0.0
          %591 = vmatprep.subr.mxu0 0.0
          %592 = vmatpush1.msra.mxu0 0.0
          %593 = vmatprep.subr.mxu0 0.0
          %594 = vmatpush1.msra.mxu0 0.0
          %595 = vmatprep.subr.mxu0 0.0
          %596 = vmatpush1.msra.mxu0 0.0
          %597 = vmatprep.subr.mxu0 0.0
          %598 = vmatpush1.msra.mxu0 0.0
          %599 = vmatprep.subr.mxu0 0.0
          %600 = vmatpush1.msra.mxu0 0.0
          %601 = vmatprep.subr.mxu0 0.0
          %602 = vmatpush1.msra.mxu0 0.0
          %603 = vmatprep.subr.mxu0 0.0
          %604 = vmatpush1.msra.mxu0 0.0
          %605 = vmatprep.subr.mxu0 0.0
          %606 = vmatpush1.msra.mxu0 0.0
          %607 = vmatprep.subr.mxu0 0.0
          %608 = vmatpush1.msra.mxu0 0.0
          %609 = vmatprep.subr.mxu0 0.0
          %610 = vmatpush1.msra.mxu0 0.0
          %611 = vmatprep.subr.mxu0 0.0
          %612 = vmatpush1.msra.mxu0 0.0
          %613 = vmatprep.subr.mxu0 0.0
          %614 = vmatpush1.msra.mxu0 0.0
          %615 = vmatprep.subr.mxu0 0.0
          %616 = vmatpush1.msra.mxu0 0.0
          %617 = vmatprep.subr.mxu0 0.0
          %618 = vmatpush1.msra.mxu0 0.0
          %619 = vmatprep.subr.mxu0 0.0
          %620 = vmatpush1.msra.mxu0 0.0
          %621 = vmatprep.mubr.f32.mxu0 0.0
          %622 = vmatmul.mubr.f32.gmra.mrb[0].mxu0 %v534
          %v623 = vpop.f32.mrb[0].mxu0
          %v624 = vadd.f32 %v530, %v623
          %v625 = vpop.f32.mrb[0].mxu0
          %626 = vmatprep.mubr.f32.mxu0 0.0
          %627 = vmatmul.mubr.f32.gmra.mrb[0].mxu0 %v537
          %v628 = vpop.f32.mrb[0].mxu0
          %v629 = vadd.f32 %v530, %v628
          %v630 = vpop.f32.mrb[0].mxu0
          %631 = vmatprep.mubr.f32.mxu0 0.0
          %632 = vmatmul.mubr.f32.gmra.mrb[0].mxu0 %v540
          %v633 = vpop.f32.mrb[0].mxu0
          %v634 = vadd.f32 %v530, %v633
          %v635 = vpop.f32.mrb[0].mxu0
          %636 = vmatprep.mubr.f32.mxu0 0.0
          %637 = vmatmul.mubr.f32.gmra.mrb[0].mxu0 %v543
          %v638 = vpop.f32.mrb[0].mxu0
          %v639 = vadd.f32 %v530, %v638
          %v640 = vpop.f32.mrb[0].mxu0
          %641 = vmatprep.mubr.f32.mxu0 0.0
          %642 = vmatmul.mubr.f32.gmra.mrb[0].mxu0 %v546
          %v643 = vpop.f32.mrb[0].mxu0
          %v644 = vadd.f32 %v530, %v643
          %v645 = vpop.f32.mrb[0].mxu0
          %646 = vmatprep.mubr.f32.mxu0 0.0
          %647 = vmatmul.mubr.f32.gmra.mrb[0].mxu0 %v549
          %v648 = vpop.f32.mrb[0].mxu0
          %v649 = vadd.f32 %v530, %v648
          %v650 = vpop.f32.mrb[0].mxu0
          %651 = vmatprep.mubr.f32.mxu0 0.0
          %652 = vmatmul.mubr.f32.gmra.mrb[0].mxu0 %v552
          %v653 = vpop.f32.mrb[0].mxu0
          %v654 = vadd.f32 %v530, %v653
          %v655 = vpop.f32.mrb[0].mxu0
          %656 = vmatprep.mubr.f32.mxu0 0.0
          %657 = vmatmul.mubr.f32.gmra.mrb[0].mxu0 %v555
          %v658 = vpop.f32.mrb[0].mxu0
          %v659 = vadd.f32 %v530, %v658
          %v660 = vpop.f32.mrb[0].mxu0
          %661 = vdwg.mxu0
          %v662 = vmax.f32 %v624, 0.0
          %v663 = vmax.f32 %v629, 0.0
          %v664 = vmax.f32 %v634, 0.0
          %v665 = vmax.f32 %v639, 0.0
          %v666 = vmax.f32 %v644, 0.0
          %v667 = vmax.f32 %v649, 0.0
          %v668 = vmax.f32 %v654, 0.0
          %v669 = vmax.f32 %v659, 0.0
          %v670 = vld [vmem:[#allocation4] sm:$0xff]
          %v671 = vld [vmem:[#allocation4 + $0x8] sm:$0xff]
          %v672 = vld [vmem:[#allocation4 + $0x10] sm:$0xff]
          %v673 = vld [vmem:[#allocation4 + $0x18] sm:$0xff]
          %v674 = vld [vmem:[#allocation4 + $0x20] sm:$0xff]
          %v675 = vld [vmem:[#allocation4 + $0x28] sm:$0xff]
          %v676 = vld [vmem:[#allocation4 + $0x30] sm:$0xff]
          %v677 = vld [vmem:[#allocation4 + $0x38] sm:$0xff]
          %v678 = vld [vmem:[#allocation5] sm:$0x1]
          %v680 = vlaneseq
          %v681 = vshrl.u32 %v680, 7
          %v682 = vsub.s32 0, %v681
          %v683 = vrot.slane %v678, %v682
          %v686 = vsel %vm443, %v662, 0
          %v689 = vsel %vm443, %v663, 0
          %v692 = vsel %vm443, %v664, 0
          %v695 = vsel %vm443, %v665, 0
          %v698 = vsel %vm443, %v666, 0
          %v701 = vsel %vm443, %v667, 0
          %v704 = vsel %vm443, %v668, 0
          %v707 = vsel %vm443, %v669, 0
          %709 = vmatprep.subr.mxu0 0.0
          %710 = vmatpush1.msra.mxu0 %v670
          %711 = vmatprep.subr.mxu0 0.0
          %712 = vmatpush1.msra.mxu0 %v671
          %713 = vmatprep.subr.mxu0 0.0
          %714 = vmatpush1.msra.mxu0 %v672
          %715 = vmatprep.subr.mxu0 0.0
          %716 = vmatpush1.msra.mxu0 %v673
          %717 = vmatprep.subr.mxu0 0.0
          %718 = vmatpush1.msra.mxu0 %v674
          %719 = vmatprep.subr.mxu0 0.0
          %720 = vmatpush1.msra.mxu0 %v675
          %721 = vmatprep.subr.mxu0 0.0
          %722 = vmatpush1.msra.mxu0 %v676
          %723 = vmatprep.subr.mxu0 0.0
          %724 = vmatpush1.msra.mxu0 %v677
          %725 = vmatprep.subr.mxu0 0.0
          %726 = vmatpush1.msra.mxu0 0.0
          %727 = vmatprep.subr.mxu0 0.0
          %728 = vmatpush1.msra.mxu0 0.0
          %729 = vmatprep.subr.mxu0 0.0
          %730 = vmatpush1.msra.mxu0 0.0
          %731 = vmatprep.subr.mxu0 0.0
          %732 = vmatpush1.msra.mxu0 0.0
          %733 = vmatprep.subr.mxu0 0.0
          %734 = vmatpush1.msra.mxu0 0.0
          %735 = vmatprep.subr.mxu0 0.0
          %736 = vmatpush1.msra.mxu0 0.0
          %737 = vmatprep.subr.mxu0 0.0
          %738 = vmatpush1.msra.mxu0 0.0
          %739 = vmatprep.subr.mxu0 0.0
          %740 = vmatpush1.msra.mxu0 0.0
          %741 = vmatprep.subr.mxu0 0.0
          %742 = vmatpush1.msra.mxu0 0.0
          %743 = vmatprep.subr.mxu0 0.0
          %744 = vmatpush1.msra.mxu0 0.0
          %745 = vmatprep.subr.mxu0 0.0
          %746 = vmatpush1.msra.mxu0 0.0
          %747 = vmatprep.subr.mxu0 0.0
          %748 = vmatpush1.msra.mxu0 0.0
          %749 = vmatprep.subr.mxu0 0.0
          %750 = vmatpush1.msra.mxu0 0.0
          %751 = vmatprep.subr.mxu0 0.0
          %752 = vmatpush1.msra.mxu0 0.0
          %753 = vmatprep.subr.mxu0 0.0
          %754 = vmatpush1.msra.mxu0 0.0
          %755 = vmatprep.subr.mxu0 0.0
          %756 = vmatpush1.msra.mxu0 0.0
          %757 = vmatprep.subr.mxu0 0.0
          %758 = vmatpush1.msra.mxu0 0.0
          %759 = vmatprep.subr.mxu0 0.0
          %760 = vmatpush1.msra.mxu0 0.0
          %761 = vmatprep.subr.mxu0 0.0
          %762 = vmatpush1.msra.mxu0 0.0
          %763 = vmatprep.subr.mxu0 0.0
          %764 = vmatpush1.msra.mxu0 0.0
          %765 = vmatprep.subr.mxu0 0.0
          %766 = vmatpush1.msra.mxu0 0.0
          %767 = vmatprep.subr.mxu0 0.0
          %768 = vmatpush1.msra.mxu0 0.0
          %769 = vmatprep.subr.mxu0 0.0
          %770 = vmatpush1.msra.mxu0 0.0
          %771 = vmatprep.subr.mxu0 0.0
          %772 = vmatpush1.msra.mxu0 0.0
          %773 = vmatprep.mubr.f32.mxu0 0.0
          %774 = vmatmul.mubr.f32.gmra.mrb[0].mxu0 %v686
          %v775 = vpop.f32.mrb[0].mxu0
          %v776 = vadd.f32 %v683, %v775
          %v777 = vpop.f32.mrb[0].mxu0
          %778 = vmatprep.mubr.f32.mxu0 0.0
          %779 = vmatmul.mubr.f32.gmra.mrb[0].mxu0 %v689
          %v780 = vpop.f32.mrb[0].mxu0
          %v781 = vadd.f32 %v683, %v780
          %v782 = vpop.f32.mrb[0].mxu0
          %783 = vmatprep.mubr.f32.mxu0 0.0
          %784 = vmatmul.mubr.f32.gmra.mrb[0].mxu0 %v692
          %v785 = vpop.f32.mrb[0].mxu0
          %v786 = vadd.f32 %v683, %v785
          %v787 = vpop.f32.mrb[0].mxu0
          %788 = vmatprep.mubr.f32.mxu0 0.0
          %789 = vmatmul.mubr.f32.gmra.mrb[0].mxu0 %v695
          %v790 = vpop.f32.mrb[0].mxu0
          %v791 = vadd.f32 %v683, %v790
          %v792 = vpop.f32.mrb[0].mxu0
          %793 = vmatprep.mubr.f32.mxu0 0.0
          %794 = vmatmul.mubr.f32.gmra.mrb[0].mxu0 %v698
          %v795 = vpop.f32.mrb[0].mxu0
          %v796 = vadd.f32 %v683, %v795
          %v797 = vpop.f32.mrb[0].mxu0
          %798 = vmatprep.mubr.f32.mxu0 0.0
          %799 = vmatmul.mubr.f32.gmra.mrb[0].mxu0 %v701
          %v800 = vpop.f32.mrb[0].mxu0
          %v801 = vadd.f32 %v683, %v800
          %v802 = vpop.f32.mrb[0].mxu0
          %803 = vmatprep.mubr.f32.mxu0 0.0
          %804 = vmatmul.mubr.f32.gmra.mrb[0].mxu0 %v704
          %v805 = vpop.f32.mrb[0].mxu0
          %v806 = vadd.f32 %v683, %v805
          %v807 = vpop.f32.mrb[0].mxu0
          %808 = vmatprep.mubr.f32.mxu0 0.0
          %809 = vmatmul.mubr.f32.gmra.mrb[0].mxu0 %v707
          %v810 = vpop.f32.mrb[0].mxu0
          %v811 = vadd.f32 %v683, %v810
          %v812 = vpop.f32.mrb[0].mxu0
          %813 = vdwg.mxu0
          %814 = vst [vmem:[%s399] sm:$0xff] %v776
          %815 = vst [vmem:[%s399 + $0x8] sm:$0xff] %v781
          %816 = vst [vmem:[%s399 + $0x10] sm:$0xff] %v786
          %817 = vst [vmem:[%s399 + $0x18] sm:$0xff] %v791
          %818 = vst [vmem:[%s399 + $0x20] sm:$0xff] %v796
          %819 = vst [vmem:[%s399 + $0x28] sm:$0xff] %v801
          %820 = vst [vmem:[%s399 + $0x30] sm:$0xff] %v806
          %821 = vst [vmem:[%s399 + $0x38] sm:$0xff] %v811
        $region60: #{merge_net_forward.1} parent=43 // pred_fallthru
          _
        %s822 = smul.u32 8, %s32
        %p823 = scmp.lt.s32.totalorder %s822, 15
        %s824 = scalar_select %p823, %s822, 15
        %s825 = smul.addr %s824, 8
        %s826 = scalar_lea.vmem %s7, %s825
        // Predicated region
        $region61: #{merge_net_forward.1} parent=43 // pred_check
          %p827 = pneg %p217
        $region62: #{merge_net_forward.1} parent=43 // pred_check_branch
          %829 = sbr.rel (%p827) target = $region64
        $region63: #{merge_net_forward.1} parent=43 // pred_region
          %s830 = smul.u32 8, %s32
        $region64: #{merge_net_forward.1} parent=43 // pred_fallthru
          _
      $region44: #{merge_net_forward.1} parent=5 // pred_fallthru
        _
      %p831 = scmp.le.s32.totalorder 2, %s23
      // Predicated region
      $region65: #{merge_net_forward.1} parent=5 // pred_check
        %p832 = pneg %p831
      $region66: #{merge_net_forward.1} parent=5 // pred_check_branch
        %834 = sbr.rel (%p832) target = $region68
      $region67: #{merge_net_forward.1} parent=5 // pred_region
        %s835 = ssub.s32 %s23, 2
        // Predicated region
        $region69: #{merge_net_forward.1} parent=67 // pred_check
          %p836 = pneg %p223
        $region70: #{merge_net_forward.1} parent=67 // pred_check_branch
          %838 = sbr.rel (%p836) target = $region72
        $region71: #{merge_net_forward.1} parent=67 // pred_region
          %s839 = smul.u32 8, %s34
          %p840 = scmp.lt.s32.totalorder %s839, 15
          %s841 = scalar_select %p840, %s839, 15
          %s842 = smul.addr %s841, 8
          %s843 = scalar_lea.vmem %s7, %s842
        $region72: #{merge_net_forward.1} parent=67 // pred_fallthru
          _
      $region68: #{merge_net_forward.1} parent=5 // pred_fallthru
        _
    $region6: #{merge_net_forward.1} parent=1 // loop_footer
      %s27 = sadd.s32 1, %s23
    $region7: #{merge_net_forward.1} parent=1 // loop_footer_branch
      %22 = sbr.rel target = $region3
    $region8: #{merge_net_forward.1} parent=1 // loop_exit
      _
    %844 = vsyncpa [#allocation9], 1
    %s845 = scalar_lea.sflag [#allocation9], 1
    %846 = vsyncpa %s845, 1
    %847 = vsyncpa [#allocation10], 1
    %s848 = scalar_lea.sflag [#allocation10], 1
    %849 = vsyncpa %s848, 1

</llo_original>
